<compile_context>
chip_gen: v7x
topology: tpu7x:2x2x1
jax: 0.10.0
libtpu: 0.0.40
codegen_flags: <defaults>
</compile_context>

<pallas_src>
import jax
import jax.numpy as jnp
from jax import lax
from jax.experimental import pallas as pl
from jax.experimental.pallas import tpu as pltpu


def mlp_kernel(xT_ref, w1_ref, b1_ref, w2c_ref, b2_ref, oT_ref):
    # First layer on the MXU: [H, D_in] @ [D_in, TB] -> [H, TB]; f32 accumulate.
    # (For compute-bound sizes on v6e/v7x, cast operands to bf16 here while keeping
    #  preferred_element_type=f32; at these sizes it is noise, so stay f32.)
    hT = jnp.dot(w1_ref[...], xT_ref[...], preferred_element_type=jnp.float32)
    hT = jax.nn.sigmoid(hT + b1_ref[...])          # bias [H,1] broadcasts over lanes; exp on EUP

    d_out = w2c_ref.shape[1]
    if d_out == 1:
        # N=1 second "matmul" moved off the MXU: VPU broadcast-multiply + sublane
        # reduction over H. Frees the MXU slot and avoids a push/pop bubble.
        out = jnp.sum(hT * w2c_ref[...], axis=0, keepdims=True)        # [1, TB]
    else:
        # General D_out path: contract H without materializing a transpose.
        out = lax.dot_general(w2c_ref[...], hT,
                              (((0,), (0,)), ((), ())),
                              preferred_element_type=jnp.float32)       # [D_out, TB]

    oT_ref[...] = (out + b2_ref[...]).astype(oT_ref.dtype)


def neural_net_forward(x, w1, b1, w2, b2):
    """Forward of NeuralNet.

    Args use PyTorch nn.Linear layouts:
      x:  [B, D_in]
      w1: [H, D_in],   b1: [H]
      w2: [D_out, H],  b2: [D_out]
    Returns [B, D_out], matching sigmoid(x @ w1.T + b1) @ w2.T + b2.
    """
    B, D_in = x.shape
    H = w1.shape[0]
    D_out = w2.shape[0]

    # Batch tile on the lane axis: multiple of 128 (lane-dense stores), capped at 512
    # (~85% of HBM roofline per measured tiling data) to stay inside v7x's 64 MiB VMEM.
    TB = min(512, 128 * pl.cdiv(B, 128))
    B_pad = TB * pl.cdiv(B, TB)

    # Pad batch to a tile multiple, then put batch on the lane axis.
    x_pad = jnp.pad(x, ((0, B_pad - B), (0, 0))) if B_pad != B else x
    xT = x_pad.T                                   # [D_in, B_pad]
    b1c = b1.reshape(H, 1)                         # column: broadcasts over lanes
    w2c = w2.T                                     # [H, D_out]
    b2c = b2.reshape(D_out, 1)

    # Explicit VMEM budget (sized for v7x's 64 MiB physical / 32 MiB default scoped).
    fp = 4
    tile_bytes = 2 * (D_in * TB + D_out * TB) * fp                 # double-buffered x/out tiles
    weight_bytes = 2 * (H * D_in + H + H * D_out + D_out) * fp     # resident params (padded)
    work_bytes = (H * TB + D_out * TB) * fp                        # hT + out working set
    vmem_limit = min(max(4 * (tile_bytes + weight_bytes + work_bytes),
                         16 * 1024 * 1024),
                     32 * 1024 * 1024)

    outT = pl.pallas_call(
        mlp_kernel,
        out_shape=jax.ShapeDtypeStruct((D_out, B_pad), x.dtype),
        grid_spec=pltpu.PrefetchScalarGridSpec(
            num_scalar_prefetch=0,
            grid=(B_pad // TB,),
            in_specs=[
                # Pipelined per-tile input: batch tiles along the lane axis.
                pl.BlockSpec((D_in, TB), lambda i: (0, i)),
                # Weights/biases: constant block index -> loaded once, VMEM-resident.
                pl.BlockSpec((H, D_in), lambda i: (0, 0)),
                pl.BlockSpec((H, 1), lambda i: (0, 0)),
                pl.BlockSpec((H, D_out), lambda i: (0, 0)),
                pl.BlockSpec((D_out, 1), lambda i: (0, 0)),
            ],
            out_specs=pl.BlockSpec((D_out, TB), lambda i: (0, i)),
        ),
        compiler_params=pltpu.CompilerParams(
            # No cross-step accumulation: batch axis is fully parallel (megacore on v7x).
            dimension_semantics=("parallel",),
            vmem_limit_bytes=vmem_limit,
        ),
    )(xT, w1, b1c, w2c, b2c)

    # Drop batch padding and restore [B, D_out] (layout plumbing only).
    return outT[:, :B].T


if __name__ == "__main__":
    key = jax.random.PRNGKey(0)
    B, D_in, H, D_out = 8, 16, 32, 1   # output_size = 1 per the module

    k_x, k_w1, k_b1, k_w2, k_b2 = jax.random.split(key, 5)
    x = jax.random.normal(k_x, (B, D_in), dtype=jnp.float32)

    # Deterministic init mimicking nn.Linear's uniform(-1/sqrt(fan_in), 1/sqrt(fan_in)),
    # stored in PyTorch layouts: w1 [H, D_in], b1 [H], w2 [D_out, H], b2 [D_out].
    lim1 = 1.0 / jnp.sqrt(jnp.float32(D_in))
    lim2 = 1.0 / jnp.sqrt(jnp.float32(H))
    w1 = jax.random.uniform(k_w1, (H, D_in), jnp.float32, -lim1, lim1)
    b1 = jax.random.uniform(k_b1, (H,), jnp.float32, -lim1, lim1)
    w2 = jax.random.uniform(k_w2, (D_out, H), jnp.float32, -lim2, lim2)
    b2 = jax.random.uniform(k_b2, (D_out,), jnp.float32, -lim2, lim2)

    out = neural_net_forward(x, w1, b1, w2, b2)
    out = jax.block_until_ready(out)

    # Pure-JAX reference (exact nn.Linear semantics).
    ref = jax.nn.sigmoid(x @ w1.T + b1) @ w2.T + b2
    assert out.shape == (B, D_out)
    assert jnp.allclose(out, ref, atol=1e-5, rtol=1e-5)

    print("KERNEL_OK")
</pallas_src>

<mosaic_0001>
module attributes {stable_mosaic.version = 11 : i64} {
  func.func @mlp_kernel(%arg0: i32, %arg1: memref<16x128xf32, #tpu.memory_space<vmem>>, %arg2: memref<32x16xf32, #tpu.memory_space<vmem>>, %arg3: memref<32x1xf32, #tpu.memory_space<vmem>>, %arg4: memref<32x1xf32, #tpu.memory_space<vmem>>, %arg5: memref<1x1xf32, #tpu.memory_space<vmem>>, %arg6: memref<1x128xf32, #tpu.memory_space<vmem>>) attributes {dimension_semantics = [#tpu.dimension_semantics<parallel>], iteration_bounds = array<i64: 1>, scalar_prefetch = 0 : i64, scratch_operands = 0 : i64, tpu.core_type = #tpu.core_type<tc>, window_params = [{transform_indices = @transform_0, window_bounds = array<i64: 16, 128>}, {pipeline_mode = #tpu.pipeline_mode<synchronous>, transform_indices = @transform_1, window_bounds = array<i64: 32, 16>}, {pipeline_mode = #tpu.pipeline_mode<synchronous>, transform_indices = @transform_2, window_bounds = array<i64: 32, 1>}, {pipeline_mode = #tpu.pipeline_mode<synchronous>, transform_indices = @transform_3, window_bounds = array<i64: 32, 1>}, {pipeline_mode = #tpu.pipeline_mode<synchronous>, transform_indices = @transform_4, window_bounds = array<i64: 1, 1>}, {transform_indices = @transform_5, window_bounds = array<i64: 1, 128>}]} {
    %c0 = arith.constant 0 : index
    %c0_0 = arith.constant 0 : index
    %0 = vector.load %arg2[%c0, %c0_0] : memref<32x16xf32, #tpu.memory_space<vmem>>, vector<32x16xf32>
    %c0_1 = arith.constant 0 : index
    %c0_2 = arith.constant 0 : index
    %1 = vector.load %arg1[%c0_1, %c0_2] : memref<16x128xf32, #tpu.memory_space<vmem>>, vector<16x128xf32>
    %cst = arith.constant dense<0.000000e+00> : vector<32x128xf32>
    %2 = tpu.matmul %0, %1, %cst {dimension_numbers = #tpu.dot_dimension_numbers<[1], [0], [0], [1], [0, 0, 1, 1], [], []>} : vector<32x16xf32>, vector<16x128xf32>, vector<32x128xf32> -> vector<32x128xf32>
    %c0_3 = arith.constant 0 : index
    %c0_4 = arith.constant 0 : index
    %3 = vector.load %arg3[%c0_3, %c0_4] : memref<32x1xf32, #tpu.memory_space<vmem>>, vector<32x1xf32>
    %4 = vector.broadcast %3 : vector<32x1xf32> to vector<32x128xf32>
    %5 = arith.addf %2, %4 : vector<32x128xf32>
    %6 = arith.negf %5 : vector<32x128xf32>
    %7 = math.exp %6 : vector<32x128xf32>
    %cst_5 = arith.constant 1.000000e+00 : f32
    %8 = vector.broadcast %cst_5 : f32 to vector<32x128xf32>
    %9 = arith.addf %8, %7 : vector<32x128xf32>
    %10 = arith.divf %8, %9 : vector<32x128xf32>
    %c0_6 = arith.constant 0 : index
    %c0_7 = arith.constant 0 : index
    %11 = vector.load %arg4[%c0_6, %c0_7] : memref<32x1xf32, #tpu.memory_space<vmem>>, vector<32x1xf32>
    %12 = vector.broadcast %11 : vector<32x1xf32> to vector<32x128xf32>
    %13 = arith.mulf %10, %12 : vector<32x128xf32>
    %cst_8 = arith.constant dense<0.000000e+00> : vector<128xf32>
    %14 = vector.multi_reduction <add>, %13, %cst_8 [0] : vector<32x128xf32> to vector<128xf32>
    %15 = vector.shape_cast %14 : vector<128xf32> to vector<1x128xf32>
    %c0_9 = arith.constant 0 : index
    %c0_10 = arith.constant 0 : index
    %16 = vector.load %arg5[%c0_9, %c0_10] : memref<1x1xf32, #tpu.memory_space<vmem>>, vector<1x1xf32>
    %17 = vector.broadcast %16 : vector<1x1xf32> to vector<1x128xf32>
    %18 = arith.addf %15, %17 : vector<1x128xf32>
    %c0_11 = arith.constant 0 : index
    %c0_12 = arith.constant 0 : index
    %19 = vector.load %arg6[%c0_11, %c0_12] : memref<1x128xf32, #tpu.memory_space<vmem>>, vector<1x128xf32>
    tpu.vector_store %arg6[%c0_11, %c0_12], %18 {strides = array<i32>} : memref<1x128xf32, #tpu.memory_space<vmem>>, vector<1x128xf32>,
    return
  }
  func.func @transform_0(%arg0: i32) -> (i32, i32) {
    %c0_i32 = arith.constant 0 : i32
    %c0_i32_0 = arith.constant 0 : i32
    return %c0_i32, %arg0 : i32, i32
  }
  func.func @transform_1(%arg0: i32) -> (i32, i32) {
    %c0_i32 = arith.constant 0 : i32
    %c0_i32_0 = arith.constant 0 : i32
    %c0_i32_1 = arith.constant 0 : i32
    return %c0_i32, %c0_i32_0 : i32, i32
  }
  func.func @transform_2(%arg0: i32) -> (i32, i32) {
    %c0_i32 = arith.constant 0 : i32
    %c0_i32_0 = arith.constant 0 : i32
    %c0_i32_1 = arith.constant 0 : i32
    return %c0_i32, %c0_i32_0 : i32, i32
  }
  func.func @transform_3(%arg0: i32) -> (i32, i32) {
    %c0_i32 = arith.constant 0 : i32
    %c0_i32_0 = arith.constant 0 : i32
    %c0_i32_1 = arith.constant 0 : i32
    return %c0_i32, %c0_i32_0 : i32, i32
  }
  func.func @transform_4(%arg0: i32) -> (i32, i32) {
    %c0_i32 = arith.constant 0 : i32
    %c0_i32_0 = arith.constant 0 : i32
    %c0_i32_1 = arith.constant 0 : i32
    return %c0_i32, %c0_i32_0 : i32, i32
  }
  func.func @transform_5(%arg0: i32) -> (i32, i32) {
    %c0_i32 = arith.constant 0 : i32
    %c0_i32_0 = arith.constant 0 : i32
    return %c0_i32, %arg0 : i32, i32
  }
}

</mosaic_0001>

<llo_original>
// kernel: tpu_custom_call.1
$region0: #{tpu_custom_call.1}
  #allocation0 [shape = 'u32[]', space=smem, size = 0x4, offset = 0x4, fixed_abs, tag = 'smem constant byte address 0x4 - core index']
  #allocation1 [shape = 'u32[144,128]{1,0:T(1,128)}', space=vmem, size = 0x12000, scoped, tag = 'internal scratch']
  #allocation2 [shape = 'f32[1,1]{1,0:T(1,128)S(1)}', space=vmem, size = 0x200, scoped, tag = 'scoped memory for tpu_custom_call.1']
  %s0 = inlined_call_operand.vmem [shape: f32[16,128], index: 0, kind: input, shape index: {}]
  %s1 = inlined_call_operand.vmem [shape: f32[32,16], index: 1, kind: input, shape index: {}]
  %s2 = inlined_call_operand.vmem [shape: f32[32,1], index: 2, kind: input, shape index: {}]
  %s3 = inlined_call_operand.vmem [shape: f32[32,1], index: 3, kind: input, shape index: {}]
  %s4 = inlined_call_operand.<no memory space> [shape: f32[1,1], index: 4, kind: input, shape index: {}]
  %s5 = inlined_call_operand.hbm [shape: f32[1,128], index: 5, kind: output, shape index: {}]
  %s6 = sld [smem:[#allocation0]]
  $region30: #{tpu_custom_call.1} parent=0
    _
  %s8 = ssub.s32 1, %s6
  %s9 = scalar_select 0, %s8, %s6
  %v10 = vstv %s4
  %11 = vst [vmem:[#allocation2] sm:$0x1] %v10
  $region1: #{tpu_custom_call.1} parent=0
    #allocation3 [shape = 'u8[512]{0}', space=vmem, size = 0x400, scoped, tag = 'output window, operand 0, single buffered']
    #allocation4 [shape = 's32[1]{0}', space=sflag, size = 0x4, scoped, tag = 'scoped memory for tpu_custom_call.1']
    %12 = vsyncpa [#allocation4], 0
    // Predicated region
    $region2: #{tpu_custom_call.1} parent=1 // pred_check
      _
    $region3: #{tpu_custom_call.1} parent=1 // pred_check_branch
      %14 = sbr.rel (0) target = $region5
    $region4: #{tpu_custom_call.1} parent=1 // pred_region
      _
    $region5: #{tpu_custom_call.1} parent=1 // pred_fallthru
      _
    // Predicated region
    $region6: #{tpu_custom_call.1} parent=1 // pred_check
      _
    $region7: #{tpu_custom_call.1} parent=1 // pred_check_branch
      %16 = sbr.rel (0) target = $region9
    $region8: #{tpu_custom_call.1} parent=1 // pred_region
      _
    $region9: #{tpu_custom_call.1} parent=1 // pred_fallthru
      _
    // Predicated region
    $region10: #{tpu_custom_call.1} parent=1 // pred_check
      _
    $region11: #{tpu_custom_call.1} parent=1 // pred_check_branch
      %18 = sbr.rel (0) target = $region13
    $region12: #{tpu_custom_call.1} parent=1 // pred_region
      _
    $region13: #{tpu_custom_call.1} parent=1 // pred_fallthru
      _
    // Predicated region
    $region14: #{tpu_custom_call.1} parent=1 // pred_check
      _
    $region15: #{tpu_custom_call.1} parent=1 // pred_check_branch
      %20 = sbr.rel (0) target = $region17
    $region16: #{tpu_custom_call.1} parent=1 // pred_region
      _
    $region17: #{tpu_custom_call.1} parent=1 // pred_fallthru
      _
    // Predicated region
    $region18: #{tpu_custom_call.1} parent=1 // pred_check
      _
    $region19: #{tpu_custom_call.1} parent=1 // pred_check_branch
      %22 = sbr.rel (0) target = $region21
    $region20: #{tpu_custom_call.1} parent=1 // pred_region
      _
    $region21: #{tpu_custom_call.1} parent=1 // pred_fallthru
      _
    %v23 = vld [vmem:[%s1] sm:$0xff]
    %v24 = vld [vmem:[%s1 + $0x8] sm:$0xff]
    %v25 = vld [vmem:[%s1 + $0x10] sm:$0xff]
    %v26 = vld [vmem:[%s1 + $0x18] sm:$0xff]
    %v27 = vld [vmem:[%s0] sm:$0xff]
    %v28 = vld [vmem:[%s0 + $0x8] sm:$0xff]
    %v29 = vld [vmem:[%s2] sm:$0xff]
    %v30 = vld [vmem:[%s2 + $0x8] sm:$0xff]
    %v31 = vld [vmem:[%s2 + $0x10] sm:$0xff]
    %v32 = vld [vmem:[%s2 + $0x18] sm:$0xff]
    %34 = vset.pattern.permute.xlu0 0
    %35 = vperm.xlu0 %34, %v29
    %v36 = vpop.permute.xlu0 %35
    %39 = vset.pattern.permute.xlu0 0
    %40 = vperm.xlu0 %39, %v30
    %v41 = vpop.permute.xlu0 %40
    %44 = vset.pattern.permute.xlu0 0
    %45 = vperm.xlu0 %44, %v31
    %v46 = vpop.permute.xlu0 %45
    %49 = vset.pattern.permute.xlu0 0
    %50 = vperm.xlu0 %49, %v32
    %v51 = vpop.permute.xlu0 %50
    %vm53 = vcmask 130048
    %v55 = vsel %vm53, %v23, 0
    %v58 = vsel %vm53, %v24, 0
    %v61 = vsel %vm53, %v25, 0
    %v64 = vsel %vm53, %v26, 0
    %66 = vmatprep.subr.mxu0 0.0
    %67 = vmatpush1.msra.mxu0 %v27
    %68 = vmatprep.subr.mxu0 0.0
    %69 = vmatpush1.msra.mxu0 %v28
    %70 = vmatprep.subr.mxu0 0.0
    %71 = vmatpush1.msra.mxu0 0.0
    %72 = vmatprep.subr.mxu0 0.0
    %73 = vmatpush1.msra.mxu0 0.0
    %74 = vmatprep.subr.mxu0 0.0
    %75 = vmatpush1.msra.mxu0 0.0
    %76 = vmatprep.subr.mxu0 0.0
    %77 = vmatpush1.msra.mxu0 0.0
    %78 = vmatprep.subr.mxu0 0.0
    %79 = vmatpush1.msra.mxu0 0.0
    %80 = vmatprep.subr.mxu0 0.0
    %81 = vmatpush1.msra.mxu0 0.0
    %82 = vmatprep.subr.mxu0 0.0
    %83 = vmatpush1.msra.mxu0 0.0
    %84 = vmatprep.subr.mxu0 0.0
    %85 = vmatpush1.msra.mxu0 0.0
    %86 = vmatprep.subr.mxu0 0.0
    %87 = vmatpush1.msra.mxu0 0.0
    %88 = vmatprep.subr.mxu0 0.0
    %89 = vmatpush1.msra.mxu0 0.0
    %90 = vmatprep.subr.mxu0 0.0
    %91 = vmatpush1.msra.mxu0 0.0
    %92 = vmatprep.subr.mxu0 0.0
    %93 = vmatpush1.msra.mxu0 0.0
    %94 = vmatprep.subr.mxu0 0.0
    %95 = vmatpush1.msra.mxu0 0.0
    %96 = vmatprep.subr.mxu0 0.0
    %97 = vmatpush1.msra.mxu0 0.0
    %98 = vmatprep.subr.mxu0 0.0
    %99 = vmatpush1.msra.mxu0 0.0
    %100 = vmatprep.subr.mxu0 0.0
    %101 = vmatpush1.msra.mxu0 0.0
    %102 = vmatprep.subr.mxu0 0.0
    %103 = vmatpush1.msra.mxu0 0.0
    %104 = vmatprep.subr.mxu0 0.0
    %105 = vmatpush1.msra.mxu0 0.0
    %106 = vmatprep.subr.mxu0 0.0
    %107 = vmatpush1.msra.mxu0 0.0
    %108 = vmatprep.subr.mxu0 0.0
    %109 = vmatpush1.msra.mxu0 0.0
    %110 = vmatprep.subr.mxu0 0.0
    %111 = vmatpush1.msra.mxu0 0.0
    %112 = vmatprep.subr.mxu0 0.0
    %113 = vmatpush1.msra.mxu0 0.0
    %114 = vmatprep.subr.mxu0 0.0
    %115 = vmatpush1.msra.mxu0 0.0
    %116 = vmatprep.subr.mxu0 0.0
    %117 = vmatpush1.msra.mxu0 0.0
    %118 = vmatprep.subr.mxu0 0.0
    %119 = vmatpush1.msra.mxu0 0.0
    %120 = vmatprep.subr.mxu0 0.0
    %121 = vmatpush1.msra.mxu0 0.0
    %122 = vmatprep.subr.mxu0 0.0
    %123 = vmatpush1.msra.mxu0 0.0
    %124 = vmatprep.subr.mxu0 0.0
    %125 = vmatpush1.msra.mxu0 0.0
    %126 = vmatprep.subr.mxu0 0.0
    %127 = vmatpush1.msra.mxu0 0.0
    %128 = vmatprep.subr.mxu0 0.0
    %129 = vmatpush1.msra.mxu0 0.0
    %130 = vmatprep.mubr.f32.mxu0 0.0
    %131 = vmatmul.mubr.f32.gmra.mrb[0].mxu0 %v55
    %v132 = vpop.f32.mrb[0].mxu0
    %v133 = vadd.f32 %v36, %v132
    %v134 = vpop.f32.mrb[0].mxu0
    %135 = vmatprep.mubr.f32.mxu0 0.0
    %136 = vmatmul.mubr.f32.gmra.mrb[0].mxu0 %v58
    %v137 = vpop.f32.mrb[0].mxu0
    %v138 = vadd.f32 %v41, %v137
    %v139 = vpop.f32.mrb[0].mxu0
    %140 = vmatprep.mubr.f32.mxu0 0.0
    %141 = vmatmul.mubr.f32.gmra.mrb[0].mxu0 %v61
    %v142 = vpop.f32.mrb[0].mxu0
    %v143 = vadd.f32 %v46, %v142
    %v144 = vpop.f32.mrb[0].mxu0
    %145 = vmatprep.mubr.f32.mxu0 0.0
    %146 = vmatmul.mubr.f32.gmra.mrb[0].mxu0 %v64
    %v147 = vpop.f32.mrb[0].mxu0
    %v148 = vadd.f32 %v51, %v147
    %v149 = vpop.f32.mrb[0].mxu0
    %150 = vdwg.mxu0
    %v151 = vxor.u32 %v133, 2147483648
    %v152 = vxor.u32 %v138, 2147483648
    %v153 = vxor.u32 %v143, 2147483648
    %v154 = vxor.u32 %v148, 2147483648
    %v155 = vmul.f32 %v151, 1.442695
    %v156 = vpow.pop %v155
    %v157 = vmul.f32 %v152, 1.442695
    %v158 = vpow.pop %v157
    %v159 = vmul.f32 %v153, 1.442695
    %v160 = vpow.pop %v159
    %v161 = vmul.f32 %v154, 1.442695
    %v162 = vpow.pop %v161
    %v163 = vadd.f32 %v156, 1.0
    %v164 = vadd.f32 %v158, 1.0
    %v165 = vadd.f32 %v160, 1.0
    %v166 = vadd.f32 %v162, 1.0
    %v167 = vrcp.pop %v163
    %v168 = vmul.f32 1.0, %v167
    %v169 = vrcp.pop %v164
    %v170 = vmul.f32 1.0, %v169
    %v171 = vrcp.pop %v165
    %v172 = vmul.f32 1.0, %v171
    %v173 = vrcp.pop %v166
    %v174 = vmul.f32 1.0, %v173
    %v175 = vld [vmem:[%s3] sm:$0xff]
    %v176 = vld [vmem:[%s3 + $0x8] sm:$0xff]
    %v177 = vld [vmem:[%s3 + $0x10] sm:$0xff]
    %v178 = vld [vmem:[%s3 + $0x18] sm:$0xff]
    %180 = vset.pattern.permute.xlu0 0
    %181 = vperm.xlu0 %180, %v175
    %v182 = vpop.permute.xlu0 %181
    %185 = vset.pattern.permute.xlu0 0
    %186 = vperm.xlu0 %185, %v176
    %v187 = vpop.permute.xlu0 %186
    %190 = vset.pattern.permute.xlu0 0
    %191 = vperm.xlu0 %190, %v177
    %v192 = vpop.permute.xlu0 %191
    %195 = vset.pattern.permute.xlu0 0
    %196 = vperm.xlu0 %195, %v178
    %v197 = vpop.permute.xlu0 %196
    %v199 = vmul.f32 %v168, %v182
    %v200 = vmul.f32 %v170, %v187
    %v201 = vmul.f32 %v172, %v192
    %v202 = vmul.f32 %v174, %v197
    %v203 = vadd.f32 %v199, %v200
    %v204 = vadd.f32 %v203, %v201
    %v205 = vadd.f32 %v204, %v202
    %v206 = vrot.slane %v205, 4
    %v207 = vadd.f32 %v205, %v206
    %v208 = vrot.slane %v207, 2
    %v209 = vadd.f32 %v207, %v208
    %v210 = vrot.slane %v209, 1
    %v211 = vadd.f32 %v209, %v210
    %v212 = vld [vmem:[#allocation2] sm:$0x1]
    %214 = vset.pattern.permute.xlu0 0
    %215 = vperm.xlu0 %214, %v212
    %v216 = vpop.permute.xlu0 %215
    %v218 = vlaneseq
    %v219 = vshrl.u32 %v218, 7
    %v220 = vsub.s32 0, %v219
    %v221 = vrot.slane %v216, %v220
    %v222 = vadd.f32 %v211, %v221
    %223 = vst [vmem:[#allocation3] sm:$0x1] %v222
    // Predicated region
    $region22: #{tpu_custom_call.1} parent=1 // pred_check
      _
    $region23: #{tpu_custom_call.1} parent=1 // pred_check_branch
      %225 = sbr.rel (0) target = $region25
    $region24: #{tpu_custom_call.1} parent=1 // pred_region
      %s227 = ssub.s32 16, 16
      %228 = vsyncadd [#allocation4], %s227
      %s230 = sshll.u32 [#allocation3], 4
      %s231 = int_to_ptr.vmem [resolvable:$true] %s230
      %233 = dma.vmem_to_hbm [thread:$0]  %s231, 16, %s5, [#allocation4]
    $region25: #{tpu_custom_call.1} parent=1 // pred_fallthru
      _
    // Predicated region
    $region26: #{tpu_custom_call.1} parent=1 // pred_check
      _
    $region27: #{tpu_custom_call.1} parent=1 // pred_check_branch
      %235 = sbr.rel (0) target = $region29
    $region28: #{tpu_custom_call.1} parent=1 // pred_region
      %236 = dma.done [#allocation4], 16
    $region29: #{tpu_custom_call.1} parent=1 // pred_fallthru
      _
    %237 = vsyncpa [#allocation4], 1

</llo_original>
